<compile_context>
chip_gen: v7x
topology: tpu7x:2x2x1
jax: 0.10.0
libtpu: 0.0.40
codegen_flags: <defaults>
</compile_context>

<pallas_src>
import functools

import jax
import jax.numpy as jnp
from jax import lax
from jax.experimental import pallas as pl
from jax.experimental.pallas import tpu as pltpu


def _round_up(x, m):
    return ((x + m - 1) // m) * m


def _cdiv(a, b):
    return (a + b - 1) // b


def _multi_tensorcore_chip():
    """True only if we positively identify a multi-TC chip (v7x)."""
    try:
        kind = jax.devices()[0].device_kind.lower()
    except Exception:
        return False
    return "v7" in kind


def rnn_sentiment_kernel(pre_ref, whh_ref, fcw_ref, fcb_ref, out_ref, h_ref,
                         *, t_total, t_chunk, needs_mask, unroll):
    """One grid step = one (batch-block, T-chunk) tile.

    pre_ref : (T_CHUNK, B_BLK, H_pad) f32  pre-activations (emb@Wih^T + bias)
    whh_ref : (H_pad, H_pad)          f32  W_hh^T, zero padded
    fcw_ref : (1, H_pad)              f32  fc1.weight row, zero padded
    fcb_ref : (1, 1)                  f32
    out_ref : (B_BLK, 1)              f32
    h_ref   : (B_BLK, H_pad)          f32  VMEM scratch, carried over T chunks
    """
    t_idx = pl.program_id(1)

    @pl.when(t_idx == 0)
    def _():
        h_ref[...] = jnp.zeros_like(h_ref)

    whh = whh_ref[...]

    # Serial recurrence: only the tiny (B_BLK,H)x(H,H) matmul + tanh per step.
    def step(t, h):
        p_t = pre_ref[t]                                    # (B_BLK, H_pad)
        h_new = jnp.tanh(
            p_t + jnp.dot(h, whh, preferred_element_type=jnp.float32))
        if needs_mask:
            # Zero time-padding is NOT inert (h keeps evolving on pad steps),
            # so freeze h on the padded tail of the last chunk.
            h_new = jnp.where(t_idx * t_chunk + t < t_total, h_new, h)
        return h_new

    h = lax.fori_loop(0, t_chunk, step, h_ref[...], unroll=unroll)
    h_ref[...] = h

    @pl.when(t_idx == pl.num_programs(1) - 1)
    def _():
        # fc1: (B,H)x(H,1) as a lane reduction (skip the N=1 MXU drain).
        out_ref[...] = (jnp.sum(h * fcw_ref[...], axis=-1, keepdims=True)
                        + fcb_ref[...])


def rnn_sentiment_forward(input_words, embedding, w_ih, w_hh, b_ih, b_hh,
                          fc_w, fc_b):
    """Reproduces RNNSentiment.forward (num_layers=1, unidirectional).

    input_words: (B, T) int32 token ids
    embedding  : (V, D) float32
    w_ih       : (H, D), w_hh: (H, H), b_ih/b_hh: (H,)   (PyTorch layouts)
    fc_w       : (1, H), fc_b: (1,)
    returns    : (B,) float32  == fc1(h.squeeze(0)).squeeze()
    """
    B, T = input_words.shape
    V, D = embedding.shape
    H = w_hh.shape[0]
    f32 = jnp.float32

    LANE, SUB = 128, 8
    H_pad = _round_up(H, LANE)

    # --- batch blocking ------------------------------------------------------
    if B > LANE:
        B_BLK = LANE
    else:
        # Give each v7x TensorCore its own batch block when B is splittable;
        # on single-TC chips keep one block (splitting re-runs the T loop).
        split = _multi_tensorcore_chip() and B > SUB
        B_BLK = _round_up(_cdiv(B, 2) if split else B, SUB)
    nb = _cdiv(B, B_BLK)
    B_pad = nb * B_BLK

    # --- T chunking (cdiv grid + in-kernel mask for the padded tail) ---------
    bytes_per_step = B_BLK * H_pad * 4
    cap_steps = max(1, (4 << 20) // bytes_per_step)    # <= 4 MiB / chunk buffer
    T_CHUNK = max(1, min(T, cap_steps))
    nt = _cdiv(T, T_CHUNK)
    T_pad = nt * T_CHUNK

    # --- fold W_ih and the biases into the embedding table (wrapper-side) ----
    # proj_table[v] = embedding[v] @ W_ih^T + (b_ih + b_hh), zero-padded to
    # H_pad lanes; the extra row V (pad token) uses a zero embedding.
    emb_rows = jnp.concatenate(
        [embedding.astype(f32), jnp.zeros((1, D), f32)], axis=0)      # (V+1, D)
    wih_t = jnp.zeros((D, H_pad), f32).at[:, :H].set(w_ih.T.astype(f32))
    bias = jnp.zeros((1, H_pad), f32).at[0, :H].set((b_ih + b_hh).astype(f32))
    proj_table = jnp.dot(emb_rows, wih_t,
                         precision=jax.lax.Precision.HIGHEST) + bias  # (V+1, H_pad)

    # --- gather straight into the padded time-major layout -------------------
    ids_tm = jnp.pad(input_words.T.astype(jnp.int32),
                     ((0, T_pad - T), (0, B_pad - B)),
                     constant_values=V)                               # (T_pad, B_pad)
    pre_tm = proj_table[ids_tm]                                       # (T_pad, B_pad, H_pad)
    # TODO(synk): move this gather in-kernel (scalar-prefetch ids + resident
    #             VMEM table) to avoid the HBM round trip of pre_tm.

    # --- remaining weights, right-multiply layout, hardware-tile padded ------
    whh = jnp.zeros((H_pad, H_pad), f32).at[:H, :H].set(w_hh.T.astype(f32))
    fcw = jnp.zeros((1, H_pad), f32).at[0, :H].set(fc_w.reshape(-1).astype(f32))
    fcb = fc_b.reshape(1, 1).astype(f32)

    kernel = functools.partial(
        rnn_sentiment_kernel,
        t_total=T, t_chunk=T_CHUNK, needs_mask=(T_pad != T),
        unroll=min(T_CHUNK, 8))

    out = pl.pallas_call(
        kernel,
        out_shape=jax.ShapeDtypeStruct((B_pad, 1), f32),
        grid_spec=pltpu.PrefetchScalarGridSpec(
            num_scalar_prefetch=0,
            grid=(nb, nt),
            in_specs=[
                pl.BlockSpec((T_CHUNK, B_BLK, H_pad), lambda b, t: (t, b, 0)),
                pl.BlockSpec((H_pad, H_pad), lambda b, t: (0, 0)),
                pl.BlockSpec((1, H_pad), lambda b, t: (0, 0)),
                pl.BlockSpec((1, 1), lambda b, t: (0, 0)),
            ],
            out_specs=pl.BlockSpec((B_BLK, 1), lambda b, t: (b, 0)),
            scratch_shapes=[
                pltpu.VMEM((B_BLK, H_pad), f32),       # hidden-state carry
            ],
        ),
        compiler_params=pltpu.CompilerParams(
            dimension_semantics=("parallel", "arbitrary"),
            vmem_limit_bytes=32 * 1024 * 1024),
    )(pre_tm, whh, fcw, fcb)

    return out[:B, 0]                                   # .squeeze() -> (B,)


def _reference_forward(input_words, embedding, w_ih, w_hh, b_ih, b_hh,
                       fc_w, fc_b):
    """Pure-JAX reference (mirrors torch nn.RNN, batch_first, tanh)."""
    emb = embedding[input_words]                # (B, T, D)
    B, T, D = emb.shape
    H = w_hh.shape[0]
    h = jnp.zeros((B, H), jnp.float32)
    for t in range(T):
        h = jnp.tanh(emb[:, t, :] @ w_ih.T + b_ih + h @ w_hh.T + b_hh)
    return (h @ fc_w.T + fc_b)[:, 0]


if __name__ == "__main__":
    # Small shapes consistent with the module (embedding dim fixed at 300 by
    # the RNN input_size; single layer, unidirectional).
    B, T = 2, 8          # batch, sequence length
    V, D = 50, 300       # vocab size, embedding dim
    H = 32               # hidden size

    key = jax.random.PRNGKey(0)
    (k_emb, k_tok, k_wih, k_whh,
     k_bih, k_bhh, k_fcw, k_fcb) = jax.random.split(key, 8)

    embedding = jax.random.normal(k_emb, (V, D), jnp.float32) * 0.1
    input_words = jax.random.randint(k_tok, (B, T), 0, V, jnp.int32)

    scale = 1.0 / jnp.sqrt(H)
    w_ih = jax.random.uniform(k_wih, (H, D), jnp.float32, -scale, scale)
    w_hh = jax.random.uniform(k_whh, (H, H), jnp.float32, -scale, scale)
    b_ih = jax.random.uniform(k_bih, (H,), jnp.float32, -scale, scale)
    b_hh = jax.random.uniform(k_bhh, (H,), jnp.float32, -scale, scale)
    fc_w = jax.random.uniform(k_fcw, (1, H), jnp.float32, -scale, scale)
    fc_b = jax.random.uniform(k_fcb, (1,), jnp.float32, -scale, scale)

    out = rnn_sentiment_forward(input_words, embedding, w_ih, w_hh,
                                b_ih, b_hh, fc_w, fc_b)
    out = jax.block_until_ready(out)

    ref = _reference_forward(input_words, embedding, w_ih, w_hh,
                             b_ih, b_hh, fc_w, fc_b)
    assert out.shape == (B,)
    assert jnp.allclose(out, ref, atol=1e-4, rtol=1e-4), (out, ref)

    print("KERNEL_OK")
</pallas_src>

<mosaic_0001>
module attributes {stable_mosaic.version = 11 : i64} {
  func.func @rnn_sentiment_kernel(%arg0: i32, %arg1: i32, %arg2: memref<8x8x128xf32, #tpu.memory_space<vmem>>, %arg3: memref<128x128xf32, #tpu.memory_space<vmem>>, %arg4: memref<1x128xf32, #tpu.memory_space<vmem>>, %arg5: memref<1x1xf32, #tpu.memory_space<vmem>>, %arg6: memref<8x1xf32, #tpu.memory_space<vmem>>, %arg7: memref<8x128xf32, #tpu.memory_space<vmem>>) attributes {dimension_semantics = [#tpu.dimension_semantics<parallel>, #tpu.dimension_semantics<arbitrary>], iteration_bounds = array<i64: 1, 1>, scalar_prefetch = 0 : i64, scratch_operands = 1 : i64, tpu.core_type = #tpu.core_type<tc>, window_params = [{transform_indices = @transform_0, window_bounds = array<i64: 8, 8, 128>}, {pipeline_mode = #tpu.pipeline_mode<synchronous>, transform_indices = @transform_1, window_bounds = array<i64: 128, 128>}, {pipeline_mode = #tpu.pipeline_mode<synchronous>, transform_indices = @transform_2, window_bounds = array<i64: 1, 128>}, {pipeline_mode = #tpu.pipeline_mode<synchronous>, transform_indices = @transform_3, window_bounds = array<i64: 1, 1>}, {transform_indices = @transform_4, window_bounds = array<i64: 8, 1>}]} {
    %c0_i32 = arith.constant 0 : i32
    %0 = arith.cmpi eq, %arg1, %c0_i32 : i32
    %1 = arith.extui %0 : i1 to i32
    %c0_i32_0 = arith.constant 0 : i32
    %2 = arith.cmpi ne, %1, %c0_i32_0 : i32
    scf.if %2 {
      %cst_32 = arith.constant 0.000000e+00 : f32
      %57 = vector.broadcast %cst_32 : f32 to vector<8x128xf32>
      %c0_33 = arith.constant 0 : index
      %c0_34 = arith.constant 0 : index
      %58 = vector.load %arg7[%c0_33, %c0_34] : memref<8x128xf32, #tpu.memory_space<vmem>>, vector<8x128xf32>
      tpu.vector_store %arg7[%c0_33, %c0_34], %57 {strides = array<i32>} : memref<8x128xf32, #tpu.memory_space<vmem>>, vector<8x128xf32>,
    } else {
    }
    %c0 = arith.constant 0 : index
    %c0_1 = arith.constant 0 : index
    %3 = vector.load %arg3[%c0, %c0_1] : memref<128x128xf32, #tpu.memory_space<vmem>>, vector<128x128xf32>
    %c0_2 = arith.constant 0 : index
    %c0_3 = arith.constant 0 : index
    %4 = vector.load %arg7[%c0_2, %c0_3] : memref<8x128xf32, #tpu.memory_space<vmem>>, vector<8x128xf32>
    %c0_i32_4 = arith.constant 0 : i32
    %5 = arith.index_cast %c0_i32_4 : i32 to index
    %c0_5 = arith.constant 0 : index
    %c0_6 = arith.constant 0 : index
    %6 = vector.load %arg2[%5, %c0_5, %c0_6] : memref<8x8x128xf32, #tpu.memory_space<vmem>>, vector<1x8x128xf32>
    %7 = vector.shape_cast %6 : vector<1x8x128xf32> to vector<8x128xf32>
    %cst = arith.constant dense<0.000000e+00> : vector<8x128xf32>
    %8 = tpu.matmul %4, %3, %cst {dimension_numbers = #tpu.dot_dimension_numbers<[1], [0], [0], [1], [0, 0, 1, 1], [], []>} : vector<8x128xf32>, vector<128x128xf32>, vector<8x128xf32> -> vector<8x128xf32>
    %9 = arith.addf %7, %8 : vector<8x128xf32>
    %10 = math.tanh %9 : vector<8x128xf32>
    %c1_i32 = arith.constant 1 : i32
    %11 = arith.index_cast %c1_i32 : i32 to index
    %c0_7 = arith.constant 0 : index
    %c0_8 = arith.constant 0 : index
    %12 = vector.load %arg2[%11, %c0_7, %c0_8] : memref<8x8x128xf32, #tpu.memory_space<vmem>>, vector<1x8x128xf32>
    %13 = vector.shape_cast %12 : vector<1x8x128xf32> to vector<8x128xf32>
    %cst_9 = arith.constant dense<0.000000e+00> : vector<8x128xf32>
    %14 = tpu.matmul %10, %3, %cst_9 {dimension_numbers = #tpu.dot_dimension_numbers<[1], [0], [0], [1], [0, 0, 1, 1], [], []>} : vector<8x128xf32>, vector<128x128xf32>, vector<8x128xf32> -> vector<8x128xf32>
    %15 = arith.addf %13, %14 : vector<8x128xf32>
    %16 = math.tanh %15 : vector<8x128xf32>
    %c2_i32 = arith.constant 2 : i32
    %17 = arith.index_cast %c2_i32 : i32 to index
    %c0_10 = arith.constant 0 : index
    %c0_11 = arith.constant 0 : index
    %18 = vector.load %arg2[%17, %c0_10, %c0_11] : memref<8x8x128xf32, #tpu.memory_space<vmem>>, vector<1x8x128xf32>
    %19 = vector.shape_cast %18 : vector<1x8x128xf32> to vector<8x128xf32>
    %cst_12 = arith.constant dense<0.000000e+00> : vector<8x128xf32>
    %20 = tpu.matmul %16, %3, %cst_12 {dimension_numbers = #tpu.dot_dimension_numbers<[1], [0], [0], [1], [0, 0, 1, 1], [], []>} : vector<8x128xf32>, vector<128x128xf32>, vector<8x128xf32> -> vector<8x128xf32>
    %21 = arith.addf %19, %20 : vector<8x128xf32>
    %22 = math.tanh %21 : vector<8x128xf32>
    %c3_i32 = arith.constant 3 : i32
    %23 = arith.index_cast %c3_i32 : i32 to index
    %c0_13 = arith.constant 0 : index
    %c0_14 = arith.constant 0 : index
    %24 = vector.load %arg2[%23, %c0_13, %c0_14] : memref<8x8x128xf32, #tpu.memory_space<vmem>>, vector<1x8x128xf32>
    %25 = vector.shape_cast %24 : vector<1x8x128xf32> to vector<8x128xf32>
    %cst_15 = arith.constant dense<0.000000e+00> : vector<8x128xf32>
    %26 = tpu.matmul %22, %3, %cst_15 {dimension_numbers = #tpu.dot_dimension_numbers<[1], [0], [0], [1], [0, 0, 1, 1], [], []>} : vector<8x128xf32>, vector<128x128xf32>, vector<8x128xf32> -> vector<8x128xf32>
    %27 = arith.addf %25, %26 : vector<8x128xf32>
    %28 = math.tanh %27 : vector<8x128xf32>
    %c4_i32 = arith.constant 4 : i32
    %29 = arith.index_cast %c4_i32 : i32 to index
    %c0_16 = arith.constant 0 : index
    %c0_17 = arith.constant 0 : index
    %30 = vector.load %arg2[%29, %c0_16, %c0_17] : memref<8x8x128xf32, #tpu.memory_space<vmem>>, vector<1x8x128xf32>
    %31 = vector.shape_cast %30 : vector<1x8x128xf32> to vector<8x128xf32>
    %cst_18 = arith.constant dense<0.000000e+00> : vector<8x128xf32>
    %32 = tpu.matmul %28, %3, %cst_18 {dimension_numbers = #tpu.dot_dimension_numbers<[1], [0], [0], [1], [0, 0, 1, 1], [], []>} : vector<8x128xf32>, vector<128x128xf32>, vector<8x128xf32> -> vector<8x128xf32>
    %33 = arith.addf %31, %32 : vector<8x128xf32>
    %34 = math.tanh %33 : vector<8x128xf32>
    %c5_i32 = arith.constant 5 : i32
    %35 = arith.index_cast %c5_i32 : i32 to index
    %c0_19 = arith.constant 0 : index
    %c0_20 = arith.constant 0 : index
    %36 = vector.load %arg2[%35, %c0_19, %c0_20] : memref<8x8x128xf32, #tpu.memory_space<vmem>>, vector<1x8x128xf32>
    %37 = vector.shape_cast %36 : vector<1x8x128xf32> to vector<8x128xf32>
    %cst_21 = arith.constant dense<0.000000e+00> : vector<8x128xf32>
    %38 = tpu.matmul %34, %3, %cst_21 {dimension_numbers = #tpu.dot_dimension_numbers<[1], [0], [0], [1], [0, 0, 1, 1], [], []>} : vector<8x128xf32>, vector<128x128xf32>, vector<8x128xf32> -> vector<8x128xf32>
    %39 = arith.addf %37, %38 : vector<8x128xf32>
    %40 = math.tanh %39 : vector<8x128xf32>
    %c6_i32 = arith.constant 6 : i32
    %41 = arith.index_cast %c6_i32 : i32 to index
    %c0_22 = arith.constant 0 : index
    %c0_23 = arith.constant 0 : index
    %42 = vector.load %arg2[%41, %c0_22, %c0_23] : memref<8x8x128xf32, #tpu.memory_space<vmem>>, vector<1x8x128xf32>
    %43 = vector.shape_cast %42 : vector<1x8x128xf32> to vector<8x128xf32>
    %cst_24 = arith.constant dense<0.000000e+00> : vector<8x128xf32>
    %44 = tpu.matmul %40, %3, %cst_24 {dimension_numbers = #tpu.dot_dimension_numbers<[1], [0], [0], [1], [0, 0, 1, 1], [], []>} : vector<8x128xf32>, vector<128x128xf32>, vector<8x128xf32> -> vector<8x128xf32>
    %45 = arith.addf %43, %44 : vector<8x128xf32>
    %46 = math.tanh %45 : vector<8x128xf32>
    %c7_i32 = arith.constant 7 : i32
    %47 = arith.index_cast %c7_i32 : i32 to index
    %c0_25 = arith.constant 0 : index
    %c0_26 = arith.constant 0 : index
    %48 = vector.load %arg2[%47, %c0_25, %c0_26] : memref<8x8x128xf32, #tpu.memory_space<vmem>>, vector<1x8x128xf32>
    %49 = vector.shape_cast %48 : vector<1x8x128xf32> to vector<8x128xf32>
    %cst_27 = arith.constant dense<0.000000e+00> : vector<8x128xf32>
    %50 = tpu.matmul %46, %3, %cst_27 {dimension_numbers = #tpu.dot_dimension_numbers<[1], [0], [0], [1], [0, 0, 1, 1], [], []>} : vector<8x128xf32>, vector<128x128xf32>, vector<8x128xf32> -> vector<8x128xf32>
    %51 = arith.addf %49, %50 : vector<8x128xf32>
    %52 = math.tanh %51 : vector<8x128xf32>
    %c8_i32 = arith.constant 8 : i32
    %c0_28 = arith.constant 0 : index
    %c0_29 = arith.constant 0 : index
    %53 = vector.load %arg7[%c0_28, %c0_29] : memref<8x128xf32, #tpu.memory_space<vmem>>, vector<8x128xf32>
    tpu.vector_store %arg7[%c0_28, %c0_29], %52 {strides = array<i32>} : memref<8x128xf32, #tpu.memory_space<vmem>>, vector<8x128xf32>,
    %c0_i32_30 = arith.constant 0 : i32
    %54 = arith.cmpi eq, %arg1, %c0_i32_30 : i32
    %55 = arith.extui %54 : i1 to i32
    %c0_i32_31 = arith.constant 0 : i32
    %56 = arith.cmpi ne, %55, %c0_i32_31 : i32
    scf.if %56 {
      %c0_32 = arith.constant 0 : index
      %c0_33 = arith.constant 0 : index
      %57 = vector.load %arg4[%c0_32, %c0_33] : memref<1x128xf32, #tpu.memory_space<vmem>>, vector<1x128xf32>
      %58 = vector.broadcast %57 : vector<1x128xf32> to vector<8x128xf32>
      %59 = arith.mulf %52, %58 : vector<8x128xf32>
      %cst_34 = arith.constant dense<0.000000e+00> : vector<8xf32>
      %60 = vector.multi_reduction <add>, %59, %cst_34 [1] : vector<8x128xf32> to vector<8xf32>
      %61 = vector.shape_cast %60 : vector<8xf32> to vector<8x1xf32>
      %c0_35 = arith.constant 0 : index
      %c0_36 = arith.constant 0 : index
      %62 = vector.load %arg5[%c0_35, %c0_36] : memref<1x1xf32, #tpu.memory_space<vmem>>, vector<1x1xf32>
      %63 = vector.broadcast %62 : vector<1x1xf32> to vector<8x1xf32>
      %64 = arith.addf %61, %63 : vector<8x1xf32>
      %c0_37 = arith.constant 0 : index
      %c0_38 = arith.constant 0 : index
      %65 = vector.load %arg6[%c0_37, %c0_38] : memref<8x1xf32, #tpu.memory_space<vmem>>, vector<8x1xf32>
      tpu.vector_store %arg6[%c0_37, %c0_38], %64 {strides = array<i32>} : memref<8x1xf32, #tpu.memory_space<vmem>>, vector<8x1xf32>,
    } else {
    }
    return
  }
  func.func @transform_0(%arg0: i32, %arg1: i32) -> (i32, i32, i32) {
    %c0_i32 = arith.constant 0 : i32
    %c0_i32_0 = arith.constant 0 : i32
    return %arg1, %arg0, %c0_i32 : i32, i32, i32
  }
  func.func @transform_1(%arg0: i32, %arg1: i32) -> (i32, i32) {
    %c0_i32 = arith.constant 0 : i32
    %c0_i32_0 = arith.constant 0 : i32
    %c0_i32_1 = arith.constant 0 : i32
    return %c0_i32, %c0_i32_0 : i32, i32
  }
  func.func @transform_2(%arg0: i32, %arg1: i32) -> (i32, i32) {
    %c0_i32 = arith.constant 0 : i32
    %c0_i32_0 = arith.constant 0 : i32
    %c0_i32_1 = arith.constant 0 : i32
    return %c0_i32, %c0_i32_0 : i32, i32
  }
  func.func @transform_3(%arg0: i32, %arg1: i32) -> (i32, i32) {
    %c0_i32 = arith.constant 0 : i32
    %c0_i32_0 = arith.constant 0 : i32
    %c0_i32_1 = arith.constant 0 : i32
    return %c0_i32, %c0_i32_0 : i32, i32
  }
  func.func @transform_4(%arg0: i32, %arg1: i32) -> (i32, i32) {
    %c0_i32 = arith.constant 0 : i32
    %c0_i32_0 = arith.constant 0 : i32
    return %arg0, %c0_i32 : i32, i32
  }
}

</mosaic_0001>

<llo_original>
// kernel: tpu_custom_call.1
$region0: #{tpu_custom_call.1}
  #allocation0 [shape = 'u32[]', space=smem, size = 0x4, offset = 0x4, fixed_abs, tag = 'smem constant byte address 0x4 - core index']
  #allocation1 [shape = 'u32[144,128]{1,0:T(1,128)}', space=vmem, size = 0x12000, scoped, tag = 'internal scratch']
  #allocation2 [shape = 'f32[8,128]{1,0:T(8,128)}', space=vmem, size = 0x1000, scoped, tag = 'scratch operand']
  #allocation3 [shape = 'f32[1,1]{1,0:T(1,128)S(1)}', space=vmem, size = 0x200, scoped, tag = 'scoped memory for tpu_custom_call.1']
  %s0 = inlined_call_operand.hbm [shape: f32[8,8,128], index: 0, kind: input, shape index: {}]
  %s1 = inlined_call_operand.hbm [shape: f32[128,128], index: 1, kind: input, shape index: {}]
  %s2 = inlined_call_operand.vmem [shape: f32[1,128], index: 2, kind: input, shape index: {}]
  %s3 = inlined_call_operand.<no memory space> [shape: f32[1,1], index: 3, kind: input, shape index: {}]
  %s4 = inlined_call_operand.vmem [shape: f32[8,1], index: 4, kind: output, shape index: {}]
  %s5 = sld [smem:[#allocation0]]
  $region42: #{tpu_custom_call.1} parent=0
    _
  %s7 = ssub.s32 1, %s5
  %s8 = scalar_select 0, %s7, %s5
  %v9 = vstv %s3
  %10 = vst [vmem:[#allocation3] sm:$0x1] %v9
  $region1: #{tpu_custom_call.1} parent=0
    #allocation4 [shape = 'u8[32768]{0}', space=vmem, size = 0x8000, scoped, tag = 'input window, operand 0, single buffered']
    #allocation5 [shape = 's32[1]{0}', space=sflag, size = 0x4, scoped, tag = 'scoped memory for tpu_custom_call.1']
    #allocation6 [shape = 'u8[65536]{0}', space=vmem, size = 0x10000, scoped, tag = 'input window, operand 1, single buffered']
    #allocation7 [shape = 's32[1]{0}', space=sflag, size = 0x4, scoped, tag = 'scoped memory for tpu_custom_call.1']
    %11 = vsyncpa [#allocation5], 0
    %12 = vsyncpa [#allocation7], 0
    // Predicated region
    $region2: #{tpu_custom_call.1} parent=1 // pred_check
      _
    $region3: #{tpu_custom_call.1} parent=1 // pred_check_branch
      %14 = sbr.rel (0) target = $region5
    $region4: #{tpu_custom_call.1} parent=1 // pred_region
      %s16 = ssub.s32 1024, 1024
      %17 = vsyncadd [#allocation5], %s16
      %s18 = sshll.u32 [#allocation4], 4
      %s19 = int_to_ptr.vmem [resolvable:$true] %s18
      %24 = dma.hbm_to_vmem [thread:$0]  %s0, 1024, %s19, [#allocation5], 128, 128, 8
    $region5: #{tpu_custom_call.1} parent=1 // pred_fallthru
      _
    // Predicated region
    $region6: #{tpu_custom_call.1} parent=1 // pred_check
      _
    $region7: #{tpu_custom_call.1} parent=1 // pred_check_branch
      %26 = sbr.rel (0) target = $region9
    $region8: #{tpu_custom_call.1} parent=1 // pred_region
      %s28 = ssub.s32 2048, 2048
      %29 = vsyncadd [#allocation7], %s28
      %s30 = sshll.u32 [#allocation6], 4
      %s31 = int_to_ptr.vmem [resolvable:$true] %s30
      %36 = dma.hbm_to_vmem [thread:$0]  %s1, 2048, %s31, [#allocation7], 128, 128, 8
    $region9: #{tpu_custom_call.1} parent=1 // pred_fallthru
      _
    // Predicated region
    $region10: #{tpu_custom_call.1} parent=1 // pred_check
      _
    $region11: #{tpu_custom_call.1} parent=1 // pred_check_branch
      %38 = sbr.rel (0) target = $region13
    $region12: #{tpu_custom_call.1} parent=1 // pred_region
      _
    $region13: #{tpu_custom_call.1} parent=1 // pred_fallthru
      _
    // Predicated region
    $region14: #{tpu_custom_call.1} parent=1 // pred_check
      _
    $region15: #{tpu_custom_call.1} parent=1 // pred_check_branch
      %40 = sbr.rel (0) target = $region17
    $region16: #{tpu_custom_call.1} parent=1 // pred_region
      _
    $region17: #{tpu_custom_call.1} parent=1 // pred_fallthru
      _
    // Predicated region
    $region18: #{tpu_custom_call.1} parent=1 // pred_check
      _
    $region19: #{tpu_custom_call.1} parent=1 // pred_check_branch
      %42 = sbr.rel (0) target = $region21
    $region20: #{tpu_custom_call.1} parent=1 // pred_region
      %43 = dma.done [#allocation5], 1024
    $region21: #{tpu_custom_call.1} parent=1 // pred_fallthru
      _
    // Predicated region
    $region22: #{tpu_custom_call.1} parent=1 // pred_check
      _
    $region23: #{tpu_custom_call.1} parent=1 // pred_check_branch
      %45 = sbr.rel (0) target = $region25
    $region24: #{tpu_custom_call.1} parent=1 // pred_region
      %46 = dma.done [#allocation7], 2048
    $region25: #{tpu_custom_call.1} parent=1 // pred_fallthru
      _
    %p47 = scmp.eq.s32.totalorder 0, 0
    // Predicated region
    $region26: #{tpu_custom_call.1} parent=1 // pred_check
      %p48 = pneg %p47
    $region27: #{tpu_custom_call.1} parent=1 // pred_check_branch
      %50 = sbr.rel (%p48) target = $region29
    $region28: #{tpu_custom_call.1} parent=1 // pred_region
      %51 = vst [vmem:[#allocation2] sm:$0xff] 0.0
    $region29: #{tpu_custom_call.1} parent=1 // pred_fallthru
      _
    %v52 = vld [vmem:[#allocation6] sm:$0xff]
    %v53 = vld [vmem:[#allocation6 + $0x8] sm:$0xff]
    %v54 = vld [vmem:[#allocation6 + $0x10] sm:$0xff]
    %v55 = vld [vmem:[#allocation6 + $0x18] sm:$0xff]
    %v56 = vld [vmem:[#allocation6 + $0x20] sm:$0xff]
    %v57 = vld [vmem:[#allocation6 + $0x28] sm:$0xff]
    %v58 = vld [vmem:[#allocation6 + $0x30] sm:$0xff]
    %v59 = vld [vmem:[#allocation6 + $0x38] sm:$0xff]
    %v60 = vld [vmem:[#allocation6 + $0x40] sm:$0xff]
    %v61 = vld [vmem:[#allocation6 + $0x48] sm:$0xff]
    %v62 = vld [vmem:[#allocation6 + $0x50] sm:$0xff]
    %v63 = vld [vmem:[#allocation6 + $0x58] sm:$0xff]
    %v64 = vld [vmem:[#allocation6 + $0x60] sm:$0xff]
    %v65 = vld [vmem:[#allocation6 + $0x68] sm:$0xff]
    %v66 = vld [vmem:[#allocation6 + $0x70] sm:$0xff]
    %v67 = vld [vmem:[#allocation6 + $0x78] sm:$0xff]
    %v68 = vld [vmem:[#allocation2] sm:$0xff]
    %v69 = vld [vmem:[#allocation4] sm:$0xff]
    %70 = vmatprep.subr.mxu0 0.0
    %71 = vmatpush1.msra.mxu0 %v52
    %72 = vmatprep.subr.mxu0 0.0
    %73 = vmatpush1.msra.mxu0 %v53
    %74 = vmatprep.subr.mxu0 0.0
    %75 = vmatpush1.msra.mxu0 %v54
    %76 = vmatprep.subr.mxu0 0.0
    %77 = vmatpush1.msra.mxu0 %v55
    %78 = vmatprep.subr.mxu0 0.0
    %79 = vmatpush1.msra.mxu0 %v56
    %80 = vmatprep.subr.mxu0 0.0
    %81 = vmatpush1.msra.mxu0 %v57
    %82 = vmatprep.subr.mxu0 0.0
    %83 = vmatpush1.msra.mxu0 %v58
    %84 = vmatprep.subr.mxu0 0.0
    %85 = vmatpush1.msra.mxu0 %v59
    %86 = vmatprep.subr.mxu0 0.0
    %87 = vmatpush1.msra.mxu0 %v60
    %88 = vmatprep.subr.mxu0 0.0
    %89 = vmatpush1.msra.mxu0 %v61
    %90 = vmatprep.subr.mxu0 0.0
    %91 = vmatpush1.msra.mxu0 %v62
    %92 = vmatprep.subr.mxu0 0.0
    %93 = vmatpush1.msra.mxu0 %v63
    %94 = vmatprep.subr.mxu0 0.0
    %95 = vmatpush1.msra.mxu0 %v64
    %96 = vmatprep.subr.mxu0 0.0
    %97 = vmatpush1.msra.mxu0 %v65
    %98 = vmatprep.subr.mxu0 0.0
    %99 = vmatpush1.msra.mxu0 %v66
    %100 = vmatprep.subr.mxu0 0.0
    %101 = vmatpush1.msra.mxu0 %v67
    %102 = vmatprep.subr.mxu0 0.0
    %103 = vmatpush1.msra.mxu0 0.0
    %104 = vmatprep.subr.mxu0 0.0
    %105 = vmatpush1.msra.mxu0 0.0
    %106 = vmatprep.subr.mxu0 0.0
    %107 = vmatpush1.msra.mxu0 0.0
    %108 = vmatprep.subr.mxu0 0.0
    %109 = vmatpush1.msra.mxu0 0.0
    %110 = vmatprep.subr.mxu0 0.0
    %111 = vmatpush1.msra.mxu0 0.0
    %112 = vmatprep.subr.mxu0 0.0
    %113 = vmatpush1.msra.mxu0 0.0
    %114 = vmatprep.subr.mxu0 0.0
    %115 = vmatpush1.msra.mxu0 0.0
    %116 = vmatprep.subr.mxu0 0.0
    %117 = vmatpush1.msra.mxu0 0.0
    %118 = vmatprep.subr.mxu0 0.0
    %119 = vmatpush1.msra.mxu0 0.0
    %120 = vmatprep.subr.mxu0 0.0
    %121 = vmatpush1.msra.mxu0 0.0
    %122 = vmatprep.subr.mxu0 0.0
    %123 = vmatpush1.msra.mxu0 0.0
    %124 = vmatprep.subr.mxu0 0.0
    %125 = vmatpush1.msra.mxu0 0.0
    %126 = vmatprep.subr.mxu0 0.0
    %127 = vmatpush1.msra.mxu0 0.0
    %128 = vmatprep.subr.mxu0 0.0
    %129 = vmatpush1.msra.mxu0 0.0
    %130 = vmatprep.subr.mxu0 0.0
    %131 = vmatpush1.msra.mxu0 0.0
    %132 = vmatprep.subr.mxu0 0.0
    %133 = vmatpush1.msra.mxu0 0.0
    %134 = vmatprep.mubr.f32.mxu0 0.0
    %135 = vmatmul.mubr.f32.gmra.mrb[0].mxu0 %v68
    %v136 = vpop.f32.mrb[0].mxu0
    %v137 = vadd.f32 0.0, %v136
    %v138 = vpop.f32.mrb[0].mxu0
    %139 = vdwg.mxu0
    %v140 = vadd.f32 %v69, %v137
    %v141 = vtanh.pop %v140
    %s142 = scalar_lea.vmem [#allocation4], 8
    %v143 = vld [vmem:[%s142] sm:$0xff]
    %144 = vmatprep.subr.mxu0 0.0
    %145 = vmatpush1.msra.mxu0 %v52
    %146 = vmatprep.subr.mxu0 0.0
    %147 = vmatpush1.msra.mxu0 %v53
    %148 = vmatprep.subr.mxu0 0.0
    %149 = vmatpush1.msra.mxu0 %v54
    %150 = vmatprep.subr.mxu0 0.0
    %151 = vmatpush1.msra.mxu0 %v55
    %152 = vmatprep.subr.mxu0 0.0
    %153 = vmatpush1.msra.mxu0 %v56
    %154 = vmatprep.subr.mxu0 0.0
    %155 = vmatpush1.msra.mxu0 %v57
    %156 = vmatprep.subr.mxu0 0.0
    %157 = vmatpush1.msra.mxu0 %v58
    %158 = vmatprep.subr.mxu0 0.0
    %159 = vmatpush1.msra.mxu0 %v59
    %160 = vmatprep.subr.mxu0 0.0
    %161 = vmatpush1.msra.mxu0 %v60
    %162 = vmatprep.subr.mxu0 0.0
    %163 = vmatpush1.msra.mxu0 %v61
    %164 = vmatprep.subr.mxu0 0.0
    %165 = vmatpush1.msra.mxu0 %v62
    %166 = vmatprep.subr.mxu0 0.0
    %167 = vmatpush1.msra.mxu0 %v63
    %168 = vmatprep.subr.mxu0 0.0
    %169 = vmatpush1.msra.mxu0 %v64
    %170 = vmatprep.subr.mxu0 0.0
    %171 = vmatpush1.msra.mxu0 %v65
    %172 = vmatprep.subr.mxu0 0.0
    %173 = vmatpush1.msra.mxu0 %v66
    %174 = vmatprep.subr.mxu0 0.0
    %175 = vmatpush1.msra.mxu0 %v67
    %176 = vmatprep.subr.mxu0 0.0
    %177 = vmatpush1.msra.mxu0 0.0
    %178 = vmatprep.subr.mxu0 0.0
    %179 = vmatpush1.msra.mxu0 0.0
    %180 = vmatprep.subr.mxu0 0.0
    %181 = vmatpush1.msra.mxu0 0.0
    %182 = vmatprep.subr.mxu0 0.0
    %183 = vmatpush1.msra.mxu0 0.0
    %184 = vmatprep.subr.mxu0 0.0
    %185 = vmatpush1.msra.mxu0 0.0
    %186 = vmatprep.subr.mxu0 0.0
    %187 = vmatpush1.msra.mxu0 0.0
    %188 = vmatprep.subr.mxu0 0.0
    %189 = vmatpush1.msra.mxu0 0.0
    %190 = vmatprep.subr.mxu0 0.0
    %191 = vmatpush1.msra.mxu0 0.0
    %192 = vmatprep.subr.mxu0 0.0
    %193 = vmatpush1.msra.mxu0 0.0
    %194 = vmatprep.subr.mxu0 0.0
    %195 = vmatpush1.msra.mxu0 0.0
    %196 = vmatprep.subr.mxu0 0.0
    %197 = vmatpush1.msra.mxu0 0.0
    %198 = vmatprep.subr.mxu0 0.0
    %199 = vmatpush1.msra.mxu0 0.0
    %200 = vmatprep.subr.mxu0 0.0
    %201 = vmatpush1.msra.mxu0 0.0
    %202 = vmatprep.subr.mxu0 0.0
    %203 = vmatpush1.msra.mxu0 0.0
    %204 = vmatprep.subr.mxu0 0.0
    %205 = vmatpush1.msra.mxu0 0.0
    %206 = vmatprep.subr.mxu0 0.0
    %207 = vmatpush1.msra.mxu0 0.0
    %208 = vmatprep.mubr.f32.mxu0 0.0
    %209 = vmatmul.mubr.f32.gmra.mrb[0].mxu0 %v141
    %v210 = vpop.f32.mrb[0].mxu0
    %v211 = vadd.f32 0.0, %v210
    %v212 = vpop.f32.mrb[0].mxu0
    %213 = vdwg.mxu0
    %v214 = vadd.f32 %v143, %v211
    %v215 = vtanh.pop %v214
    %s216 = scalar_lea.vmem [#allocation4], 16
    %v217 = vld [vmem:[%s216] sm:$0xff]
    %218 = vmatprep.subr.mxu0 0.0
    %219 = vmatpush1.msra.mxu0 %v52
    %220 = vmatprep.subr.mxu0 0.0
    %221 = vmatpush1.msra.mxu0 %v53
    %222 = vmatprep.subr.mxu0 0.0
    %223 = vmatpush1.msra.mxu0 %v54
    %224 = vmatprep.subr.mxu0 0.0
    %225 = vmatpush1.msra.mxu0 %v55
    %226 = vmatprep.subr.mxu0 0.0
    %227 = vmatpush1.msra.mxu0 %v56
    %228 = vmatprep.subr.mxu0 0.0
    %229 = vmatpush1.msra.mxu0 %v57
    %230 = vmatprep.subr.mxu0 0.0
    %231 = vmatpush1.msra.mxu0 %v58
    %232 = vmatprep.subr.mxu0 0.0
    %233 = vmatpush1.msra.mxu0 %v59
    %234 = vmatprep.subr.mxu0 0.0
    %235 = vmatpush1.msra.mxu0 %v60
    %236 = vmatprep.subr.mxu0 0.0
    %237 = vmatpush1.msra.mxu0 %v61
    %238 = vmatprep.subr.mxu0 0.0
    %239 = vmatpush1.msra.mxu0 %v62
    %240 = vmatprep.subr.mxu0 0.0
    %241 = vmatpush1.msra.mxu0 %v63
    %242 = vmatprep.subr.mxu0 0.0
    %243 = vmatpush1.msra.mxu0 %v64
    %244 = vmatprep.subr.mxu0 0.0
    %245 = vmatpush1.msra.mxu0 %v65
    %246 = vmatprep.subr.mxu0 0.0
    %247 = vmatpush1.msra.mxu0 %v66
    %248 = vmatprep.subr.mxu0 0.0
    %249 = vmatpush1.msra.mxu0 %v67
    %250 = vmatprep.subr.mxu0 0.0
    %251 = vmatpush1.msra.mxu0 0.0
    %252 = vmatprep.subr.mxu0 0.0
    %253 = vmatpush1.msra.mxu0 0.0
    %254 = vmatprep.subr.mxu0 0.0
    %255 = vmatpush1.msra.mxu0 0.0
    %256 = vmatprep.subr.mxu0 0.0
    %257 = vmatpush1.msra.mxu0 0.0
    %258 = vmatprep.subr.mxu0 0.0
    %259 = vmatpush1.msra.mxu0 0.0
    %260 = vmatprep.subr.mxu0 0.0
    %261 = vmatpush1.msra.mxu0 0.0
    %262 = vmatprep.subr.mxu0 0.0
    %263 = vmatpush1.msra.mxu0 0.0
    %264 = vmatprep.subr.mxu0 0.0
    %265 = vmatpush1.msra.mxu0 0.0
    %266 = vmatprep.subr.mxu0 0.0
    %267 = vmatpush1.msra.mxu0 0.0
    %268 = vmatprep.subr.mxu0 0.0
    %269 = vmatpush1.msra.mxu0 0.0
    %270 = vmatprep.subr.mxu0 0.0
    %271 = vmatpush1.msra.mxu0 0.0
    %272 = vmatprep.subr.mxu0 0.0
    %273 = vmatpush1.msra.mxu0 0.0
    %274 = vmatprep.subr.mxu0 0.0
    %275 = vmatpush1.msra.mxu0 0.0
    %276 = vmatprep.subr.mxu0 0.0
    %277 = vmatpush1.msra.mxu0 0.0
    %278 = vmatprep.subr.mxu0 0.0
    %279 = vmatpush1.msra.mxu0 0.0
    %280 = vmatprep.subr.mxu0 0.0
    %281 = vmatpush1.msra.mxu0 0.0
    %282 = vmatprep.mubr.f32.mxu0 0.0
    %283 = vmatmul.mubr.f32.gmra.mrb[0].mxu0 %v215
    %v284 = vpop.f32.mrb[0].mxu0
    %v285 = vadd.f32 0.0, %v284
    %v286 = vpop.f32.mrb[0].mxu0
    %287 = vdwg.mxu0
    %v288 = vadd.f32 %v217, %v285
    %v289 = vtanh.pop %v288
    %s290 = scalar_lea.vmem [#allocation4], 24
    %v291 = vld [vmem:[%s290] sm:$0xff]
    %292 = vmatprep.subr.mxu0 0.0
    %293 = vmatpush1.msra.mxu0 %v52
    %294 = vmatprep.subr.mxu0 0.0
    %295 = vmatpush1.msra.mxu0 %v53
    %296 = vmatprep.subr.mxu0 0.0
    %297 = vmatpush1.msra.mxu0 %v54
    %298 = vmatprep.subr.mxu0 0.0
    %299 = vmatpush1.msra.mxu0 %v55
    %300 = vmatprep.subr.mxu0 0.0
    %301 = vmatpush1.msra.mxu0 %v56
    %302 = vmatprep.subr.mxu0 0.0
    %303 = vmatpush1.msra.mxu0 %v57
    %304 = vmatprep.subr.mxu0 0.0
    %305 = vmatpush1.msra.mxu0 %v58
    %306 = vmatprep.subr.mxu0 0.0
    %307 = vmatpush1.msra.mxu0 %v59
    %308 = vmatprep.subr.mxu0 0.0
    %309 = vmatpush1.msra.mxu0 %v60
    %310 = vmatprep.subr.mxu0 0.0
    %311 = vmatpush1.msra.mxu0 %v61
    %312 = vmatprep.subr.mxu0 0.0
    %313 = vmatpush1.msra.mxu0 %v62
    %314 = vmatprep.subr.mxu0 0.0
    %315 = vmatpush1.msra.mxu0 %v63
    %316 = vmatprep.subr.mxu0 0.0
    %317 = vmatpush1.msra.mxu0 %v64
    %318 = vmatprep.subr.mxu0 0.0
    %319 = vmatpush1.msra.mxu0 %v65
    %320 = vmatprep.subr.mxu0 0.0
    %321 = vmatpush1.msra.mxu0 %v66
    %322 = vmatprep.subr.mxu0 0.0
    %323 = vmatpush1.msra.mxu0 %v67
    %324 = vmatprep.subr.mxu0 0.0
    %325 = vmatpush1.msra.mxu0 0.0
    %326 = vmatprep.subr.mxu0 0.0
    %327 = vmatpush1.msra.mxu0 0.0
    %328 = vmatprep.subr.mxu0 0.0
    %329 = vmatpush1.msra.mxu0 0.0
    %330 = vmatprep.subr.mxu0 0.0
    %331 = vmatpush1.msra.mxu0 0.0
    %332 = vmatprep.subr.mxu0 0.0
    %333 = vmatpush1.msra.mxu0 0.0
    %334 = vmatprep.subr.mxu0 0.0
    %335 = vmatpush1.msra.mxu0 0.0
    %336 = vmatprep.subr.mxu0 0.0
    %337 = vmatpush1.msra.mxu0 0.0
    %338 = vmatprep.subr.mxu0 0.0
    %339 = vmatpush1.msra.mxu0 0.0
    %340 = vmatprep.subr.mxu0 0.0
    %341 = vmatpush1.msra.mxu0 0.0
    %342 = vmatprep.subr.mxu0 0.0
    %343 = vmatpush1.msra.mxu0 0.0
    %344 = vmatprep.subr.mxu0 0.0
    %345 = vmatpush1.msra.mxu0 0.0
    %346 = vmatprep.subr.mxu0 0.0
    %347 = vmatpush1.msra.mxu0 0.0
    %348 = vmatprep.subr.mxu0 0.0
    %349 = vmatpush1.msra.mxu0 0.0
    %350 = vmatprep.subr.mxu0 0.0
    %351 = vmatpush1.msra.mxu0 0.0
    %352 = vmatprep.subr.mxu0 0.0
    %353 = vmatpush1.msra.mxu0 0.0
    %354 = vmatprep.subr.mxu0 0.0
    %355 = vmatpush1.msra.mxu0 0.0
    %356 = vmatprep.mubr.f32.mxu0 0.0
    %357 = vmatmul.mubr.f32.gmra.mrb[0].mxu0 %v289
    %v358 = vpop.f32.mrb[0].mxu0
    %v359 = vadd.f32 0.0, %v358
    %v360 = vpop.f32.mrb[0].mxu0
    %361 = vdwg.mxu0
    %v362 = vadd.f32 %v291, %v359
    %v363 = vtanh.pop %v362
    %s364 = scalar_lea.vmem [#allocation4], 32
    %v365 = vld [vmem:[%s364] sm:$0xff]
    %366 = vmatprep.subr.mxu0 0.0
    %367 = vmatpush1.msra.mxu0 %v52
    %368 = vmatprep.subr.mxu0 0.0
    %369 = vmatpush1.msra.mxu0 %v53
    %370 = vmatprep.subr.mxu0 0.0
    %371 = vmatpush1.msra.mxu0 %v54
    %372 = vmatprep.subr.mxu0 0.0
    %373 = vmatpush1.msra.mxu0 %v55
    %374 = vmatprep.subr.mxu0 0.0
    %375 = vmatpush1.msra.mxu0 %v56
    %376 = vmatprep.subr.mxu0 0.0
    %377 = vmatpush1.msra.mxu0 %v57
    %378 = vmatprep.subr.mxu0 0.0
    %379 = vmatpush1.msra.mxu0 %v58
    %380 = vmatprep.subr.mxu0 0.0
    %381 = vmatpush1.msra.mxu0 %v59
    %382 = vmatprep.subr.mxu0 0.0
    %383 = vmatpush1.msra.mxu0 %v60
    %384 = vmatprep.subr.mxu0 0.0
    %385 = vmatpush1.msra.mxu0 %v61
    %386 = vmatprep.subr.mxu0 0.0
    %387 = vmatpush1.msra.mxu0 %v62
    %388 = vmatprep.subr.mxu0 0.0
    %389 = vmatpush1.msra.mxu0 %v63
    %390 = vmatprep.subr.mxu0 0.0
    %391 = vmatpush1.msra.mxu0 %v64
    %392 = vmatprep.subr.mxu0 0.0
    %393 = vmatpush1.msra.mxu0 %v65
    %394 = vmatprep.subr.mxu0 0.0
    %395 = vmatpush1.msra.mxu0 %v66
    %396 = vmatprep.subr.mxu0 0.0
    %397 = vmatpush1.msra.mxu0 %v67
    %398 = vmatprep.subr.mxu0 0.0
    %399 = vmatpush1.msra.mxu0 0.0
    %400 = vmatprep.subr.mxu0 0.0
    %401 = vmatpush1.msra.mxu0 0.0
    %402 = vmatprep.subr.mxu0 0.0
    %403 = vmatpush1.msra.mxu0 0.0
    %404 = vmatprep.subr.mxu0 0.0
    %405 = vmatpush1.msra.mxu0 0.0
    %406 = vmatprep.subr.mxu0 0.0
    %407 = vmatpush1.msra.mxu0 0.0
    %408 = vmatprep.subr.mxu0 0.0
    %409 = vmatpush1.msra.mxu0 0.0
    %410 = vmatprep.subr.mxu0 0.0
    %411 = vmatpush1.msra.mxu0 0.0
    %412 = vmatprep.subr.mxu0 0.0
    %413 = vmatpush1.msra.mxu0 0.0
    %414 = vmatprep.subr.mxu0 0.0
    %415 = vmatpush1.msra.mxu0 0.0
    %416 = vmatprep.subr.mxu0 0.0
    %417 = vmatpush1.msra.mxu0 0.0
    %418 = vmatprep.subr.mxu0 0.0
    %419 = vmatpush1.msra.mxu0 0.0
    %420 = vmatprep.subr.mxu0 0.0
    %421 = vmatpush1.msra.mxu0 0.0
    %422 = vmatprep.subr.mxu0 0.0
    %423 = vmatpush1.msra.mxu0 0.0
    %424 = vmatprep.subr.mxu0 0.0
    %425 = vmatpush1.msra.mxu0 0.0
    %426 = vmatprep.subr.mxu0 0.0
    %427 = vmatpush1.msra.mxu0 0.0
    %428 = vmatprep.subr.mxu0 0.0
    %429 = vmatpush1.msra.mxu0 0.0
    %430 = vmatprep.mubr.f32.mxu0 0.0
    %431 = vmatmul.mubr.f32.gmra.mrb[0].mxu0 %v363
    %v432 = vpop.f32.mrb[0].mxu0
    %v433 = vadd.f32 0.0, %v432
    %v434 = vpop.f32.mrb[0].mxu0
    %435 = vdwg.mxu0
    %v436 = vadd.f32 %v365, %v433
    %v437 = vtanh.pop %v436
    %s438 = scalar_lea.vmem [#allocation4], 40
    %v439 = vld [vmem:[%s438] sm:$0xff]
    %440 = vmatprep.subr.mxu0 0.0
    %441 = vmatpush1.msra.mxu0 %v52
    %442 = vmatprep.subr.mxu0 0.0
    %443 = vmatpush1.msra.mxu0 %v53
    %444 = vmatprep.subr.mxu0 0.0
    %445 = vmatpush1.msra.mxu0 %v54
    %446 = vmatprep.subr.mxu0 0.0
    %447 = vmatpush1.msra.mxu0 %v55
    %448 = vmatprep.subr.mxu0 0.0
    %449 = vmatpush1.msra.mxu0 %v56
    %450 = vmatprep.subr.mxu0 0.0
    %451 = vmatpush1.msra.mxu0 %v57
    %452 = vmatprep.subr.mxu0 0.0
    %453 = vmatpush1.msra.mxu0 %v58
    %454 = vmatprep.subr.mxu0 0.0
    %455 = vmatpush1.msra.mxu0 %v59
    %456 = vmatprep.subr.mxu0 0.0
    %457 = vmatpush1.msra.mxu0 %v60
    %458 = vmatprep.subr.mxu0 0.0
    %459 = vmatpush1.msra.mxu0 %v61
    %460 = vmatprep.subr.mxu0 0.0
    %461 = vmatpush1.msra.mxu0 %v62
    %462 = vmatprep.subr.mxu0 0.0
    %463 = vmatpush1.msra.mxu0 %v63
    %464 = vmatprep.subr.mxu0 0.0
    %465 = vmatpush1.msra.mxu0 %v64
    %466 = vmatprep.subr.mxu0 0.0
    %467 = vmatpush1.msra.mxu0 %v65
    %468 = vmatprep.subr.mxu0 0.0
    %469 = vmatpush1.msra.mxu0 %v66
    %470 = vmatprep.subr.mxu0 0.0
    %471 = vmatpush1.msra.mxu0 %v67
    %472 = vmatprep.subr.mxu0 0.0
    %473 = vmatpush1.msra.mxu0 0.0
    %474 = vmatprep.subr.mxu0 0.0
    %475 = vmatpush1.msra.mxu0 0.0
    %476 = vmatprep.subr.mxu0 0.0
    %477 = vmatpush1.msra.mxu0 0.0
    %478 = vmatprep.subr.mxu0 0.0
    %479 = vmatpush1.msra.mxu0 0.0
    %480 = vmatprep.subr.mxu0 0.0
    %481 = vmatpush1.msra.mxu0 0.0
    %482 = vmatprep.subr.mxu0 0.0
    %483 = vmatpush1.msra.mxu0 0.0
    %484 = vmatprep.subr.mxu0 0.0
    %485 = vmatpush1.msra.mxu0 0.0
    %486 = vmatprep.subr.mxu0 0.0
    %487 = vmatpush1.msra.mxu0 0.0
    %488 = vmatprep.subr.mxu0 0.0
    %489 = vmatpush1.msra.mxu0 0.0
    %490 = vmatprep.subr.mxu0 0.0
    %491 = vmatpush1.msra.mxu0 0.0
    %492 = vmatprep.subr.mxu0 0.0
    %493 = vmatpush1.msra.mxu0 0.0
    %494 = vmatprep.subr.mxu0 0.0
    %495 = vmatpush1.msra.mxu0 0.0
    %496 = vmatprep.subr.mxu0 0.0
    %497 = vmatpush1.msra.mxu0 0.0
    %498 = vmatprep.subr.mxu0 0.0
    %499 = vmatpush1.msra.mxu0 0.0
    %500 = vmatprep.subr.mxu0 0.0
    %501 = vmatpush1.msra.mxu0 0.0
    %502 = vmatprep.subr.mxu0 0.0
    %503 = vmatpush1.msra.mxu0 0.0
    %504 = vmatprep.mubr.f32.mxu0 0.0
    %505 = vmatmul.mubr.f32.gmra.mrb[0].mxu0 %v437
    %v506 = vpop.f32.mrb[0].mxu0
    %v507 = vadd.f32 0.0, %v506
    %v508 = vpop.f32.mrb[0].mxu0
    %509 = vdwg.mxu0
    %v510 = vadd.f32 %v439, %v507
    %v511 = vtanh.pop %v510
    %s512 = scalar_lea.vmem [#allocation4], 48
    %v513 = vld [vmem:[%s512] sm:$0xff]
    %514 = vmatprep.subr.mxu0 0.0
    %515 = vmatpush1.msra.mxu0 %v52
    %516 = vmatprep.subr.mxu0 0.0
    %517 = vmatpush1.msra.mxu0 %v53
    %518 = vmatprep.subr.mxu0 0.0
    %519 = vmatpush1.msra.mxu0 %v54
    %520 = vmatprep.subr.mxu0 0.0
    %521 = vmatpush1.msra.mxu0 %v55
    %522 = vmatprep.subr.mxu0 0.0
    %523 = vmatpush1.msra.mxu0 %v56
    %524 = vmatprep.subr.mxu0 0.0
    %525 = vmatpush1.msra.mxu0 %v57
    %526 = vmatprep.subr.mxu0 0.0
    %527 = vmatpush1.msra.mxu0 %v58
    %528 = vmatprep.subr.mxu0 0.0
    %529 = vmatpush1.msra.mxu0 %v59
    %530 = vmatprep.subr.mxu0 0.0
    %531 = vmatpush1.msra.mxu0 %v60
    %532 = vmatprep.subr.mxu0 0.0
    %533 = vmatpush1.msra.mxu0 %v61
    %534 = vmatprep.subr.mxu0 0.0
    %535 = vmatpush1.msra.mxu0 %v62
    %536 = vmatprep.subr.mxu0 0.0
    %537 = vmatpush1.msra.mxu0 %v63
    %538 = vmatprep.subr.mxu0 0.0
    %539 = vmatpush1.msra.mxu0 %v64
    %540 = vmatprep.subr.mxu0 0.0
    %541 = vmatpush1.msra.mxu0 %v65
    %542 = vmatprep.subr.mxu0 0.0
    %543 = vmatpush1.msra.mxu0 %v66
    %544 = vmatprep.subr.mxu0 0.0
    %545 = vmatpush1.msra.mxu0 %v67
    %546 = vmatprep.subr.mxu0 0.0
    %547 = vmatpush1.msra.mxu0 0.0
    %548 = vmatprep.subr.mxu0 0.0
    %549 = vmatpush1.msra.mxu0 0.0
    %550 = vmatprep.subr.mxu0 0.0
    %551 = vmatpush1.msra.mxu0 0.0
    %552 = vmatprep.subr.mxu0 0.0
    %553 = vmatpush1.msra.mxu0 0.0
    %554 = vmatprep.subr.mxu0 0.0
    %555 = vmatpush1.msra.mxu0 0.0
    %556 = vmatprep.subr.mxu0 0.0
    %557 = vmatpush1.msra.mxu0 0.0
    %558 = vmatprep.subr.mxu0 0.0
    %559 = vmatpush1.msra.mxu0 0.0
    %560 = vmatprep.subr.mxu0 0.0
    %561 = vmatpush1.msra.mxu0 0.0
    %562 = vmatprep.subr.mxu0 0.0
    %563 = vmatpush1.msra.mxu0 0.0
    %564 = vmatprep.subr.mxu0 0.0
    %565 = vmatpush1.msra.mxu0 0.0
    %566 = vmatprep.subr.mxu0 0.0
    %567 = vmatpush1.msra.mxu0 0.0
    %568 = vmatprep.subr.mxu0 0.0
    %569 = vmatpush1.msra.mxu0 0.0
    %570 = vmatprep.subr.mxu0 0.0
    %571 = vmatpush1.msra.mxu0 0.0
    %572 = vmatprep.subr.mxu0 0.0
    %573 = vmatpush1.msra.mxu0 0.0
    %574 = vmatprep.subr.mxu0 0.0
    %575 = vmatpush1.msra.mxu0 0.0
    %576 = vmatprep.subr.mxu0 0.0
    %577 = vmatpush1.msra.mxu0 0.0
    %578 = vmatprep.mubr.f32.mxu0 0.0
    %579 = vmatmul.mubr.f32.gmra.mrb[0].mxu0 %v511
    %v580 = vpop.f32.mrb[0].mxu0
    %v581 = vadd.f32 0.0, %v580
    %v582 = vpop.f32.mrb[0].mxu0
    %583 = vdwg.mxu0
    %v584 = vadd.f32 %v513, %v581
    %v585 = vtanh.pop %v584
    %s586 = scalar_lea.vmem [#allocation4], 56
    %v587 = vld [vmem:[%s586] sm:$0xff]
    %588 = vmatprep.subr.mxu0 0.0
    %589 = vmatpush1.msra.mxu0 %v52
    %590 = vmatprep.subr.mxu0 0.0
    %591 = vmatpush1.msra.mxu0 %v53
    %592 = vmatprep.subr.mxu0 0.0
    %593 = vmatpush1.msra.mxu0 %v54
    %594 = vmatprep.subr.mxu0 0.0
    %595 = vmatpush1.msra.mxu0 %v55
    %596 = vmatprep.subr.mxu0 0.0
    %597 = vmatpush1.msra.mxu0 %v56
    %598 = vmatprep.subr.mxu0 0.0
    %599 = vmatpush1.msra.mxu0 %v57
    %600 = vmatprep.subr.mxu0 0.0
    %601 = vmatpush1.msra.mxu0 %v58
    %602 = vmatprep.subr.mxu0 0.0
    %603 = vmatpush1.msra.mxu0 %v59
    %604 = vmatprep.subr.mxu0 0.0
    %605 = vmatpush1.msra.mxu0 %v60
    %606 = vmatprep.subr.mxu0 0.0
    %607 = vmatpush1.msra.mxu0 %v61
    %608 = vmatprep.subr.mxu0 0.0
    %609 = vmatpush1.msra.mxu0 %v62
    %610 = vmatprep.subr.mxu0 0.0
    %611 = vmatpush1.msra.mxu0 %v63
    %612 = vmatprep.subr.mxu0 0.0
    %613 = vmatpush1.msra.mxu0 %v64
    %614 = vmatprep.subr.mxu0 0.0
    %615 = vmatpush1.msra.mxu0 %v65
    %616 = vmatprep.subr.mxu0 0.0
    %617 = vmatpush1.msra.mxu0 %v66
    %618 = vmatprep.subr.mxu0 0.0
    %619 = vmatpush1.msra.mxu0 %v67
    %620 = vmatprep.subr.mxu0 0.0
    %621 = vmatpush1.msra.mxu0 0.0
    %622 = vmatprep.subr.mxu0 0.0
    %623 = vmatpush1.msra.mxu0 0.0
    %624 = vmatprep.subr.mxu0 0.0
    %625 = vmatpush1.msra.mxu0 0.0
    %626 = vmatprep.subr.mxu0 0.0
    %627 = vmatpush1.msra.mxu0 0.0
    %628 = vmatprep.subr.mxu0 0.0
    %629 = vmatpush1.msra.mxu0 0.0
    %630 = vmatprep.subr.mxu0 0.0
    %631 = vmatpush1.msra.mxu0 0.0
    %632 = vmatprep.subr.mxu0 0.0
    %633 = vmatpush1.msra.mxu0 0.0
    %634 = vmatprep.subr.mxu0 0.0
    %635 = vmatpush1.msra.mxu0 0.0
    %636 = vmatprep.subr.mxu0 0.0
    %637 = vmatpush1.msra.mxu0 0.0
    %638 = vmatprep.subr.mxu0 0.0
    %639 = vmatpush1.msra.mxu0 0.0
    %640 = vmatprep.subr.mxu0 0.0
    %641 = vmatpush1.msra.mxu0 0.0
    %642 = vmatprep.subr.mxu0 0.0
    %643 = vmatpush1.msra.mxu0 0.0
    %644 = vmatprep.subr.mxu0 0.0
    %645 = vmatpush1.msra.mxu0 0.0
    %646 = vmatprep.subr.mxu0 0.0
    %647 = vmatpush1.msra.mxu0 0.0
    %648 = vmatprep.subr.mxu0 0.0
    %649 = vmatpush1.msra.mxu0 0.0
    %650 = vmatprep.subr.mxu0 0.0
    %651 = vmatpush1.msra.mxu0 0.0
    %652 = vmatprep.mubr.f32.mxu0 0.0
    %653 = vmatmul.mubr.f32.gmra.mrb[0].mxu0 %v585
    %v654 = vpop.f32.mrb[0].mxu0
    %v655 = vadd.f32 0.0, %v654
    %v656 = vpop.f32.mrb[0].mxu0
    %657 = vdwg.mxu0
    %v658 = vadd.f32 %v587, %v655
    %v659 = vtanh.pop %v658
    %660 = vst [vmem:[#allocation2] sm:$0xff] %v659
    // Predicated region
    $region30: #{tpu_custom_call.1} parent=1 // pred_check
      %p661 = pneg %p47
    $region31: #{tpu_custom_call.1} parent=1 // pred_check_branch
      %663 = sbr.rel (%p661) target = $region33
    $region32: #{tpu_custom_call.1} parent=1 // pred_region
      %v664 = vld [vmem:[%s2] sm:$0x1]
      %v666 = vlaneseq
      %v667 = vshrl.u32 %v666, 7
      %v668 = vsub.s32 0, %v667
      %v669 = vrot.slane %v664, %v668
      %v671 = vmul.f32 %v659, %v669
      %672 = vadd.xlane.f32.xlu0 %v671
      %v673 = vpop.xlane.xlu0 %672
      %v674 = vld [vmem:[#allocation3] sm:$0x1]
      %v676 = vlaneseq
      %v677 = vshrl.u32 %v676, 7
      %v678 = vsub.s32 0, %v677
      %v679 = vrot.slane %v674, %v678
      %v681 = vadd.f32 %v673, %v679
      %vm682 = vcmask 7168
      %683 = vst.msk [vmem:[%s4] sm:$0xff] %vm682, %v681
    $region33: #{tpu_custom_call.1} parent=1 // pred_fallthru
      _
    // Predicated region
    $region34: #{tpu_custom_call.1} parent=1 // pred_check
      _
    $region35: #{tpu_custom_call.1} parent=1 // pred_check_branch
      %685 = sbr.rel (0) target = $region37
    $region36: #{tpu_custom_call.1} parent=1 // pred_region
      _
    $region37: #{tpu_custom_call.1} parent=1 // pred_fallthru
      _
    // Predicated region
    $region38: #{tpu_custom_call.1} parent=1 // pred_check
      _
    $region39: #{tpu_custom_call.1} parent=1 // pred_check_branch
      %687 = sbr.rel (0) target = $region41
    $region40: #{tpu_custom_call.1} parent=1 // pred_region
      _
    $region41: #{tpu_custom_call.1} parent=1 // pred_fallthru
      _
    %688 = vsyncpa [#allocation5], 1
    %689 = vsyncpa [#allocation7], 1

</llo_original>
